<compile_context>
chip_gen: v7x
topology: tpu7x:2x2x1
jax: 0.10.0
libtpu: 0.0.40
codegen_flags: <defaults>
</compile_context>

<pallas_src>
import functools

import jax
import jax.numpy as jnp
from jax import lax
from jax.experimental import pallas as pl
from jax.experimental.pallas import tpu as pltpu


def _round_up(a, b):
    return (a + b - 1) // b * b


def _cdiv(a, b):
    return (a + b - 1) // b


# ---------------------------------------------------------------------------
# Kernels
# ---------------------------------------------------------------------------

def _conv_k1_kernel(*refs, has_mask):
    """kernel_size == 1 fast path: one (TILE_L, C_in) @ (C_in, TILE_CO)."""
    if has_mask:
        x_ref, m_ref, w_ref, b_ref, o_ref = refs
        x = x_ref[...] * m_ref[...]
    else:
        x_ref, w_ref, b_ref, o_ref = refs
        x = x_ref[...]
    y = jnp.dot(x, w_ref[...], preferred_element_type=jnp.float32)
    o_ref[...] = (y + b_ref[...]).astype(o_ref.dtype)


def _conv_halo_kernel(*refs, kernel_size, dilation, tile_l, halo, halo_r,
                      has_mask):
    """kernel_size > 1: single halo-extended scratch + per-tap dots.

    Only ONE assembly copy (tile_l + halo rows); every tap is a static
    sublane slice of the scratch feeding the MXU directly.
    """
    if has_mask:
        x_ref, xh_ref, m_ref, mh_ref, w_ref, b_ref, o_ref, xext_ref = refs
    else:
        x_ref, xh_ref, w_ref, b_ref, o_ref, xext_ref = refs

    t = pl.program_id(2)

    xm = x_ref[...]
    if has_mask:
        xm = xm * m_ref[...]
    xext_ref[halo:halo + tile_l, :] = xm

    # Halo region: zeros for the first tile (causal left pad), otherwise the
    # last `halo` rows of the previous tile (masked on the way in).
    @pl.when(t == 0)
    def _():
        xext_ref[0:halo, :] = jnp.zeros((halo,) + xm.shape[1:], xm.dtype)

    @pl.when(t > 0)
    def _():
        h = xh_ref[halo_r - halo:, :]
        if has_mask:
            h = h * mh_ref[halo_r - halo:, :]
        xext_ref[0:halo, :] = h

    # Per-tap dots with f32 accumulation (no fold: better for the
    # store/HBM-bound regime and on v5e's 128-deep MXU).
    y = jnp.dot(xext_ref[0:tile_l, :], w_ref[0],
                preferred_element_type=jnp.float32)
    for k in range(1, kernel_size):
        s = k * dilation
        y = y + jnp.dot(xext_ref[s:s + tile_l, :], w_ref[k],
                        preferred_element_type=jnp.float32)

    o_ref[...] = (y + b_ref[...]).astype(o_ref.dtype)


# ---------------------------------------------------------------------------
# Wrapper
# ---------------------------------------------------------------------------

def masked_causal_conv1d(x, weight, bias, input_mask=None, *,
                         dilation=1, groups=1, tile_l=None,
                         weight_resident_bytes=None, weight_dtype=None):
    """Forward pass of MaskedCausalConv1d.

    x:          (N, L, C_in)
    input_mask: (N, L, 1) or None
    weight:     (C_out, C_in // groups, K)   (PyTorch Conv1d layout)
    bias:       (C_out,)
    returns     (N, L, C_out)
    """
    N, L, c_in = x.shape
    c_out, cig, K = weight.shape
    assert c_in % groups == 0 and c_out % groups == 0
    assert cig == c_in // groups

    halo = (K - 1) * dilation
    dtype = x.dtype
    isz = jnp.dtype(dtype).itemsize
    w_isz = jnp.dtype(weight_dtype or dtype).itemsize
    has_mask = input_mask is not None

    halo_r = _round_up(halo, 8) if halo > 0 else 0   # 8-aligned halo block
    unit = halo_r if halo_r > 0 else 8               # tile_l alignment unit

    # ---- VMEM budget (generation-aware; never exceed physical) -----------
    try:
        phys = int(pltpu.get_tpu_info().vmem_capacity_bytes)
    except Exception:
        phys = 64 * 1024 * 1024                      # v7x physical (smallest)
    cap = (phys * 3) // 4                            # hard request ceiling
    budget = (cap * 7) // 10                         # working-set target

    # ---- optional c_out tiling so the weight block is never huge ---------
    if weight_resident_bytes is None:
        weight_resident_bytes = min(budget // 4, 16 * 2 ** 20)
    tile_co = c_out
    if c_out % 128 == 0 and K * c_in * c_out * w_isz > weight_resident_bytes:
        cands = [d for d in range(128, c_out, 128) if c_out % d == 0]
        if cands:
            tile_co = cands[0]
            for cand in sorted(cands, reverse=True):
                if K * c_in * cand * w_isz <= weight_resident_bytes:
                    tile_co = cand
                    break
    co_t = c_out // tile_co

    # ---- L tiling: >= ~8 grid steps when possible, <= 1024 rows ----------
    if tile_l is None:
        t_needed = max(1, _cdiv(8, max(1, N * co_t)))
        tile_l = min(1024, max(1, _cdiv(L, t_needed)))
    tile_l = max(unit, _round_up(tile_l, unit))

    def vmem_est(tl):
        ext_rows = _round_up(tl + halo, 8)
        est = 2 * isz * tl * c_in                    # x double-buffer
        est += 3 * 4 * tl * tile_co                  # out x2 + f32 acc
        est += 2 * w_isz * K * c_in * tile_co        # weight
        est += 2 * 4 * tile_co                       # bias
        if has_mask:
            est += 2 * isz * tl
        if K > 1:
            est += 2 * isz * halo_r * c_in
            if has_mask:
                est += 2 * isz * halo_r
            est += isz * ext_rows * c_in             # xext scratch
        return est

    while vmem_est(tile_l) > budget and tile_l > unit:
        nt = max(unit, _round_up(tile_l // 2, unit))
        if nt == tile_l:
            break
        tile_l = nt

    T = _cdiv(L, tile_l)
    L_r = T * tile_l
    hpb = (tile_l // halo_r) if halo_r > 0 else 1    # halo blocks per tile

    # ---- inputs: natural channel width; right-pad L only when needed -----
    xp = x
    mp = input_mask.astype(dtype) if has_mask else None
    if L_r != L:
        xp = jnp.pad(x, ((0, 0), (0, L_r - L), (0, 0)))
        if has_mask:
            mp = jnp.pad(mp, ((0, 0), (0, L_r - L), (0, 0)))

    # ---- weights: (K, C_in, C_out) dense (block-diagonal if grouped) -----
    if groups == 1:
        w_dense = jnp.transpose(weight, (2, 1, 0))
    else:
        cog = c_out // groups
        wg = weight.reshape(groups, cog, cig, K)
        w_dense = jnp.zeros((K, c_in, c_out), weight.dtype)
        for g in range(groups):
            w_dense = w_dense.at[:, g * cig:(g + 1) * cig,
                                 g * cog:(g + 1) * cog].set(
                jnp.transpose(wg[g], (2, 1, 0)))
    w_dense = w_dense.astype(weight_dtype or dtype)
    b_arg = bias.reshape(1, c_out).astype(jnp.float32)

    out_shape = jax.ShapeDtypeStruct((N, L_r, c_out), dtype)

    grid = (N, co_t, T)                              # t innermost: weight stays
    x_spec = pl.BlockSpec((None, tile_l, c_in), lambda n, co, t: (n, t, 0))
    m_spec = pl.BlockSpec((None, tile_l, 1), lambda n, co, t: (n, t, 0))
    b_spec = pl.BlockSpec((1, tile_co), lambda n, co, t: (0, co))
    o_spec = pl.BlockSpec((None, tile_l, tile_co), lambda n, co, t: (n, t, co))

    if K == 1:
        w_spec = pl.BlockSpec((c_in, tile_co), lambda n, co, t: (0, co))
        in_specs = [x_spec] + ([m_spec] if has_mask else []) + [w_spec, b_spec]
        args = [xp] + ([mp] if has_mask else []) + [w_dense[0], b_arg]
        kernel = functools.partial(_conv_k1_kernel, has_mask=has_mask)
        scratch = []
    else:
        def halo_map(n, co, t):
            # Last halo_r rows of the previous tile; any valid block for t==0
            # (kernel zero-fills the halo region in that case).
            return (n, jnp.maximum(t * hpb - 1, 0), 0)

        xh_spec = pl.BlockSpec((None, halo_r, c_in), halo_map)
        mh_spec = pl.BlockSpec((None, halo_r, 1), halo_map)
        w_spec = pl.BlockSpec((K, c_in, tile_co), lambda n, co, t: (0, 0, co))
        ext_rows = _round_up(tile_l + halo, 8)
        scratch = [pltpu.VMEM((ext_rows, c_in), dtype)]
        if has_mask:
            in_specs = [x_spec, xh_spec, m_spec, mh_spec, w_spec, b_spec]
            args = [xp, xp, mp, mp, w_dense, b_arg]
        else:
            in_specs = [x_spec, xh_spec, w_spec, b_spec]
            args = [xp, xp, w_dense, b_arg]
        kernel = functools.partial(
            _conv_halo_kernel, kernel_size=K, dilation=dilation,
            tile_l=tile_l, halo=halo, halo_r=halo_r, has_mask=has_mask)

    grid_spec = pltpu.PrefetchScalarGridSpec(
        num_scalar_prefetch=0,
        grid=grid,
        in_specs=in_specs,
        out_specs=o_spec,
        scratch_shapes=scratch,
    )

    est = vmem_est(tile_l)
    compiler_kwargs = dict(
        dimension_semantics=("parallel", "parallel", "parallel"))
    if est > 12 * 2 ** 20:
        # Only raise the scoped limit when needed, and never above ~75% of
        # the physical VMEM of the current generation (v7x: 64 MiB).
        compiler_kwargs["vmem_limit_bytes"] = int(
            min(cap, max(2 * est, 32 * 2 ** 20)))

    out = pl.pallas_call(
        kernel,
        out_shape=out_shape,
        grid_spec=grid_spec,
        compiler_params=pltpu.CompilerParams(**compiler_kwargs),
    )(*args)

    if L_r != L:
        out = out[:, :L, :]
    return out


# ---------------------------------------------------------------------------
# Pure-JAX reference reproducing the PyTorch forward exactly
# ---------------------------------------------------------------------------

def _reference(x, weight, bias, input_mask, dilation, groups):
    if input_mask is not None:
        x = x * input_mask
    xt = jnp.transpose(x, (0, 2, 1))                       # (N, C_in, L)
    zeros = (weight.shape[2] - 1) * dilation
    xp = jnp.pad(xt, ((0, 0), (0, 0), (zeros, 0)))         # causal left pad
    y = lax.conv_general_dilated(
        xp, weight, window_strides=(1,), padding="VALID",
        rhs_dilation=(dilation,),
        dimension_numbers=("NCH", "OIH", "NCH"),
        feature_group_count=groups,
        precision=lax.Precision.HIGHEST)
    y = y + bias[None, :, None]
    return jnp.transpose(y, (0, 2, 1))                     # (N, L, C_out)


if __name__ == "__main__":
    key = jax.random.PRNGKey(0)

    def run_case(N, L, c_in, c_out, K, dilation, groups, with_mask, tile,
                 case_key, atol=1e-4, **kw):
        kx, km, kw_, kb = jax.random.split(case_key, 4)
        x = jax.random.normal(kx, (N, L, c_in), dtype=jnp.float32)
        mask = None
        if with_mask:
            mask = (jax.random.uniform(km, (N, L, 1)) > 0.25).astype(
                jnp.float32)
        weight = 0.1 * jax.random.normal(
            kw_, (c_out, c_in // groups, K), dtype=jnp.float32)
        bias = 0.1 * jax.random.normal(kb, (c_out,), dtype=jnp.float32)

        out = masked_causal_conv1d(x, weight, bias, mask,
                                   dilation=dilation, groups=groups,
                                   tile_l=tile, **kw)
        out = jax.block_until_ready(out)
        ref = _reference(x, weight, bias, mask, dilation, groups)
        assert out.shape == (N, L, c_out)
        err = jnp.max(jnp.abs(out - ref))
        assert jnp.allclose(out, ref, atol=atol, rtol=atol), (
            f"max abs err = {err}")

    keys = jax.random.split(key, 6)
    # Main case (mask + dilation), narrow channels, per-tap dots.
    run_case(2, 16, 8, 8, 3, 2, 1, True, None, keys[0])
    # Multi-tile along L (halo crosses tile boundaries) + grouped conv.
    run_case(2, 32, 8, 8, 3, 1, 2, True, 8, keys[1])
    # kernel_size == 1 fast path, no mask.
    run_case(2, 16, 8, 8, 1, 1, 1, False, None, keys[2])
    # Wide-ish natural channels (c_in = 192, not a multiple of 128).
    run_case(1, 24, 192, 8, 2, 3, 1, False, None, keys[3])
    # Forced c_out tiling path (weight not fully resident) + mask.
    run_case(2, 256, 256, 256, 3, 1, 1, True, None, keys[4], atol=1e-3,
             weight_resident_bytes=1024)
    # Long, non-tile-multiple L: right pad + multi-tile halo reuse.
    run_case(1, 3000, 16, 32, 4, 2, 1, True, None, keys[5], atol=1e-3)

    print("KERNEL_OK")
</pallas_src>

<mosaic_0001>
module attributes {stable_mosaic.version = 11 : i64} {
  func.func @_conv_halo_kernel(%arg0: i32, %arg1: i32, %arg2: i32, %arg3: memref<1x8x8xf32, #tpu.memory_space<vmem>>, %arg4: memref<1x8x8xf32, #tpu.memory_space<vmem>>, %arg5: memref<1x8x1xf32, #tpu.memory_space<vmem>>, %arg6: memref<1x8x1xf32, #tpu.memory_space<vmem>>, %arg7: memref<3x8x8xf32, #tpu.memory_space<vmem>>, %arg8: memref<1x8xf32, #tpu.memory_space<vmem>>, %arg9: memref<1x8x8xf32, #tpu.memory_space<vmem>>, %arg10: memref<16x8xf32, #tpu.memory_space<vmem>>) attributes {dimension_semantics = [#tpu.dimension_semantics<parallel>, #tpu.dimension_semantics<parallel>, #tpu.dimension_semantics<parallel>], iteration_bounds = array<i64: 2, 1, 2>, scalar_prefetch = 0 : i64, scratch_operands = 1 : i64, tpu.core_type = #tpu.core_type<tc>, window_params = [{transform_indices = @transform_0, window_bounds = array<i64: 1, 8, 8>}, {transform_indices = @transform_1, window_bounds = array<i64: 1, 8, 8>}, {transform_indices = @transform_2, window_bounds = array<i64: 1, 8, 1>}, {transform_indices = @transform_3, window_bounds = array<i64: 1, 8, 1>}, {transform_indices = @transform_4, window_bounds = array<i64: 3, 8, 8>}, {transform_indices = @transform_5, window_bounds = array<i64: 1, 8>}, {transform_indices = @transform_6, window_bounds = array<i64: 1, 8, 8>}]} {
    %c0 = arith.constant 0 : index
    %c0_0 = arith.constant 0 : index
    %c0_1 = arith.constant 0 : index
    %0 = vector.load %arg3[%c0, %c0_0, %c0_1] : memref<1x8x8xf32, #tpu.memory_space<vmem>>, vector<1x8x8xf32>
    %1 = vector.shape_cast %0 : vector<1x8x8xf32> to vector<8x8xf32>
    %c0_2 = arith.constant 0 : index
    %c0_3 = arith.constant 0 : index
    %c0_4 = arith.constant 0 : index
    %2 = vector.load %arg5[%c0_2, %c0_3, %c0_4] : memref<1x8x1xf32, #tpu.memory_space<vmem>>, vector<1x8x1xf32>
    %3 = vector.shape_cast %2 : vector<1x8x1xf32> to vector<8x1xf32>
    %4 = vector.broadcast %3 : vector<8x1xf32> to vector<8x8xf32>
    %5 = arith.mulf %1, %4 : vector<8x8xf32>
    %c4 = arith.constant 4 : index
    %c0_5 = arith.constant 0 : index
    %6 = vector.load %arg10[%c4, %c0_5] : memref<16x8xf32, #tpu.memory_space<vmem>>, vector<8x8xf32>
    tpu.vector_store %arg10[%c4, %c0_5], %5 {strides = array<i32>} : memref<16x8xf32, #tpu.memory_space<vmem>>, vector<8x8xf32>,
    %c0_i32 = arith.constant 0 : i32
    %7 = arith.cmpi eq, %arg2, %c0_i32 : i32
    %8 = arith.extui %7 : i1 to i32
    %c0_i32_6 = arith.constant 0 : i32
    %9 = arith.cmpi ne, %8, %c0_i32_6 : i32
    scf.if %9 {
      %cst_29 = arith.constant 0.000000e+00 : f32
      %33 = vector.broadcast %cst_29 : f32 to vector<4x8xf32>
      %c0_30 = arith.constant 0 : index
      %c0_31 = arith.constant 0 : index
      %34 = vector.load %arg10[%c0_30, %c0_31] : memref<16x8xf32, #tpu.memory_space<vmem>>, vector<4x8xf32>
      tpu.vector_store %arg10[%c0_30, %c0_31], %33 {strides = array<i32>} : memref<16x8xf32, #tpu.memory_space<vmem>>, vector<4x8xf32>,
    } else {
    }
    %c0_i32_7 = arith.constant 0 : i32
    %10 = arith.cmpi sgt, %arg2, %c0_i32_7 : i32
    %11 = arith.extui %10 : i1 to i32
    %c0_i32_8 = arith.constant 0 : i32
    %12 = arith.cmpi ne, %11, %c0_i32_8 : i32
    scf.if %12 {
      %c0_29 = arith.constant 0 : index
      %c4_30 = arith.constant 4 : index
      %c0_31 = arith.constant 0 : index
      %33 = vector.load %arg4[%c0_29, %c4_30, %c0_31] : memref<1x8x8xf32, #tpu.memory_space<vmem>>, vector<1x4x8xf32>
      %34 = vector.shape_cast %33 : vector<1x4x8xf32> to vector<4x8xf32>
      %c0_32 = arith.constant 0 : index
      %c4_33 = arith.constant 4 : index
      %c0_34 = arith.constant 0 : index
      %35 = vector.load %arg6[%c0_32, %c4_33, %c0_34] : memref<1x8x1xf32, #tpu.memory_space<vmem>>, vector<1x4x1xf32>
      %36 = vector.shape_cast %35 : vector<1x4x1xf32> to vector<4x1xf32>
      %37 = vector.broadcast %36 : vector<4x1xf32> to vector<4x8xf32>
      %38 = arith.mulf %34, %37 : vector<4x8xf32>
      %c0_35 = arith.constant 0 : index
      %c0_36 = arith.constant 0 : index
      %39 = vector.load %arg10[%c0_35, %c0_36] : memref<16x8xf32, #tpu.memory_space<vmem>>, vector<4x8xf32>
      tpu.vector_store %arg10[%c0_35, %c0_36], %38 {strides = array<i32>} : memref<16x8xf32, #tpu.memory_space<vmem>>, vector<4x8xf32>,
    } else {
    }
    %c0_9 = arith.constant 0 : index
    %c0_10 = arith.constant 0 : index
    %13 = vector.load %arg10[%c0_9, %c0_10] : memref<16x8xf32, #tpu.memory_space<vmem>>, vector<8x8xf32>
    %c0_11 = arith.constant 0 : index
    %c0_12 = arith.constant 0 : index
    %c0_13 = arith.constant 0 : index
    %14 = vector.load %arg7[%c0_11, %c0_12, %c0_13] : memref<3x8x8xf32, #tpu.memory_space<vmem>>, vector<1x8x8xf32>
    %15 = vector.shape_cast %14 : vector<1x8x8xf32> to vector<8x8xf32>
    %cst = arith.constant dense<0.000000e+00> : vector<8x8xf32>
    %16 = tpu.matmul %13, %15, %cst {dimension_numbers = #tpu.dot_dimension_numbers<[1], [0], [0], [1], [0, 0, 1, 1], [], []>} : vector<8x8xf32>, vector<8x8xf32>, vector<8x8xf32> -> vector<8x8xf32>
    %c2 = arith.constant 2 : index
    %c0_14 = arith.constant 0 : index
    %17 = vector.load %arg10[%c2, %c0_14] : memref<16x8xf32, #tpu.memory_space<vmem>>, vector<8x8xf32>
    %c1 = arith.constant 1 : index
    %c0_15 = arith.constant 0 : index
    %c0_16 = arith.constant 0 : index
    %18 = vector.load %arg7[%c1, %c0_15, %c0_16] : memref<3x8x8xf32, #tpu.memory_space<vmem>>, vector<1x8x8xf32>
    %19 = vector.shape_cast %18 : vector<1x8x8xf32> to vector<8x8xf32>
    %cst_17 = arith.constant dense<0.000000e+00> : vector<8x8xf32>
    %20 = tpu.matmul %17, %19, %cst_17 {dimension_numbers = #tpu.dot_dimension_numbers<[1], [0], [0], [1], [0, 0, 1, 1], [], []>} : vector<8x8xf32>, vector<8x8xf32>, vector<8x8xf32> -> vector<8x8xf32>
    %21 = arith.addf %16, %20 : vector<8x8xf32>
    %c4_18 = arith.constant 4 : index
    %c0_19 = arith.constant 0 : index
    %22 = vector.load %arg10[%c4_18, %c0_19] : memref<16x8xf32, #tpu.memory_space<vmem>>, vector<8x8xf32>
    %c2_20 = arith.constant 2 : index
    %c0_21 = arith.constant 0 : index
    %c0_22 = arith.constant 0 : index
    %23 = vector.load %arg7[%c2_20, %c0_21, %c0_22] : memref<3x8x8xf32, #tpu.memory_space<vmem>>, vector<1x8x8xf32>
    %24 = vector.shape_cast %23 : vector<1x8x8xf32> to vector<8x8xf32>
    %cst_23 = arith.constant dense<0.000000e+00> : vector<8x8xf32>
    %25 = tpu.matmul %22, %24, %cst_23 {dimension_numbers = #tpu.dot_dimension_numbers<[1], [0], [0], [1], [0, 0, 1, 1], [], []>} : vector<8x8xf32>, vector<8x8xf32>, vector<8x8xf32> -> vector<8x8xf32>
    %26 = arith.addf %21, %25 : vector<8x8xf32>
    %c0_24 = arith.constant 0 : index
    %c0_25 = arith.constant 0 : index
    %27 = vector.load %arg8[%c0_24, %c0_25] : memref<1x8xf32, #tpu.memory_space<vmem>>, vector<1x8xf32>
    %28 = vector.broadcast %27 : vector<1x8xf32> to vector<8x8xf32>
    %29 = arith.addf %26, %28 : vector<8x8xf32>
    %c0_26 = arith.constant 0 : index
    %c0_27 = arith.constant 0 : index
    %c0_28 = arith.constant 0 : index
    %30 = vector.load %arg9[%c0_26, %c0_27, %c0_28] : memref<1x8x8xf32, #tpu.memory_space<vmem>>, vector<1x8x8xf32>
    %31 = vector.shape_cast %30 : vector<1x8x8xf32> to vector<8x8xf32>
    %32 = vector.shape_cast %29 : vector<8x8xf32> to vector<1x8x8xf32>
    tpu.vector_store %arg9[%c0_26, %c0_27, %c0_28], %32 {strides = array<i32>} : memref<1x8x8xf32, #tpu.memory_space<vmem>>, vector<1x8x8xf32>,
    return
  }
  func.func @transform_0(%arg0: i32, %arg1: i32, %arg2: i32) -> (i32, i32, i32) {
    %c0_i32 = arith.constant 0 : i32
    %c0_i32_0 = arith.constant 0 : i32
    return %arg0, %arg2, %c0_i32 : i32, i32, i32
  }
  func.func @transform_1(%arg0: i32, %arg1: i32, %arg2: i32) -> (i32, i32, i32) {
    %c1_i32 = arith.constant 1 : i32
    %0 = arith.muli %arg2, %c1_i32 : i32
    %c1_i32_0 = arith.constant 1 : i32
    %1 = arith.subi %0, %c1_i32_0 : i32
    %c0_i32 = arith.constant 0 : i32
    %2 = arith.maxsi %1, %c0_i32 : i32
    %c0_i32_1 = arith.constant 0 : i32
    %c0_i32_2 = arith.constant 0 : i32
    return %arg0, %2, %c0_i32_1 : i32, i32, i32
  }
  func.func @transform_2(%arg0: i32, %arg1: i32, %arg2: i32) -> (i32, i32, i32) {
    %c0_i32 = arith.constant 0 : i32
    %c0_i32_0 = arith.constant 0 : i32
    return %arg0, %arg2, %c0_i32 : i32, i32, i32
  }
  func.func @transform_3(%arg0: i32, %arg1: i32, %arg2: i32) -> (i32, i32, i32) {
    %c1_i32 = arith.constant 1 : i32
    %0 = arith.muli %arg2, %c1_i32 : i32
    %c1_i32_0 = arith.constant 1 : i32
    %1 = arith.subi %0, %c1_i32_0 : i32
    %c0_i32 = arith.constant 0 : i32
    %2 = arith.maxsi %1, %c0_i32 : i32
    %c0_i32_1 = arith.constant 0 : i32
    %c0_i32_2 = arith.constant 0 : i32
    return %arg0, %2, %c0_i32_1 : i32, i32, i32
  }
  func.func @transform_4(%arg0: i32, %arg1: i32, %arg2: i32) -> (i32, i32, i32) {
    %c0_i32 = arith.constant 0 : i32
    %c0_i32_0 = arith.constant 0 : i32
    %c0_i32_1 = arith.constant 0 : i32
    return %c0_i32, %c0_i32_0, %arg1 : i32, i32, i32
  }
  func.func @transform_5(%arg0: i32, %arg1: i32, %arg2: i32) -> (i32, i32) {
    %c0_i32 = arith.constant 0 : i32
    %c0_i32_0 = arith.constant 0 : i32
    return %c0_i32, %arg1 : i32, i32
  }
  func.func @transform_6(%arg0: i32, %arg1: i32, %arg2: i32) -> (i32, i32, i32) {
    %c0_i32 = arith.constant 0 : i32
    return %arg0, %arg2, %arg1 : i32, i32, i32
  }
}

</mosaic_0001>

<llo_original>
// kernel: tpu_custom_call.1
$region0: #{tpu_custom_call.1}
  #allocation0 [shape = 'u32[]', space=smem, size = 0x4, offset = 0x4, fixed_abs, tag = 'smem constant byte address 0x4 - core index']
  #allocation1 [shape = 'u32[144,128]{1,0:T(1,128)}', space=vmem, size = 0x12000, scoped, tag = 'internal scratch']
  #allocation2 [shape = 'f32[16,8]{1,0:T(8,128)}', space=vmem, size = 0x2000, scoped, tag = 'scratch operand']
  %s0 = inlined_call_operand.vmem [shape: f32[2,16,8], index: 0, kind: input, shape index: {}]
  %s1 = inlined_call_operand.vmem [shape: f32[2,16,8], index: 1, kind: input, shape index: {}]
  %s2 = inlined_call_operand.vmem [shape: f32[2,16,1], index: 2, kind: input, shape index: {}]
  %s3 = inlined_call_operand.vmem [shape: f32[2,16,1], index: 3, kind: input, shape index: {}]
  %s4 = inlined_call_operand.vmem [shape: f32[3,8,8], index: 4, kind: input, shape index: {}]
  %s5 = inlined_call_operand.vmem [shape: f32[1,8], index: 5, kind: input, shape index: {}]
  %s6 = inlined_call_operand.vmem [shape: f32[2,16,8], index: 6, kind: output, shape index: {}]
  %s7 = sld [smem:[#allocation0]]
  $region65: #{tpu_custom_call.1} parent=0
    _
  %s9 = ssub.s32 1, %s7
  %s10 = scalar_select 0, %s9, %s7
  loop: start=0, step=1, limit=6
  $region2: #{tpu_custom_call.1} parent=0 // loop_pre_header
    _
  $region3: #{tpu_custom_call.1} parent=0 // loop_header
    %s12 = sphi 0, %s16
    %p13 = scmp.ge.s32.totalorder %s12, 6
    %s19 = sphi 0, %s38
    %s20 = sphi 0, %s34
    %s21 = sphi 0, %s30
    %s22 = sphi 0, %s19
    %s23 = sphi 0, %s20
    %s24 = sphi 0, %s21
    %s25 = sphi 0, %s22
    %s26 = sphi 0, %s23
    %s27 = sphi 0, %s24
    %s43 = sphi 0, %s45
    %s46 = sphi 0, %s43
    %s47 = sphi 0, %s46
    %s63 = sphi 0, %s47
    %s77 = sphi 0, %s79
    %s80 = sphi 0, %s77
    %s81 = sphi 0, %s80
    %s97 = sphi 0, %s81
    %s105 = sphi 0, %s107
    %s108 = sphi 0, %s105
    %s109 = sphi 0, %s108
    %s125 = sphi 0, %s109
    %s139 = sphi 0, %s141
    %s142 = sphi 0, %s139
    %s143 = sphi 0, %s142
    %s159 = sphi 0, %s143
    %s165 = sphi 0, %s167
    %s168 = sphi 0, %s165
    %s169 = sphi 0, %s168
    %s185 = sphi 0, %s169
    %s191 = sphi 0, %s193
    %s194 = sphi 0, %s191
    %s195 = sphi 0, %s194
    %s211 = sphi 0, %s195
    %s221 = sphi 0, %s223
    %s224 = sphi 0, %s221
    %s225 = sphi 0, %s224
    %s241 = sphi 0, %s225
  $region4: #{tpu_custom_call.1} parent=0 // loop_header_branch
    %15 = sbr.rel (%p13) target = $region8
  $region5: #{tpu_custom_call.1} parent=0 // loop_body
    %s17 = ssub.s32 %s12, 1
    %s18 = ssub.s32 %s12, 2
    %s28 = sadd.s32 1, %s21
    %p29 = scmp.ge.s32.totalorder %s28, 2
    %s30 = scalar_select %p29, 0, %s28
    %s31 = sadd.s32 1, %s20
    %s32 = scalar_select %p29, %s31, %s20
    %p33 = scmp.ge.s32.totalorder %s32, 1
    %s34 = scalar_select %p33, 0, %s32
    %s35 = sadd.s32 1, %s19
    %s36 = scalar_select %p33, %s35, %s19
    %p37 = scmp.ge.s32.totalorder %s36, 2
    %s38 = scalar_select %p37, 0, %s36
    %s39 = ssub.s32 %s19, %s38
    %s40 = ssub.s32 %s21, %s30
    %s41 = sor.u32 %s39, %s40
    %p42 = scmp.eq.s32.totalorder %s41, 0
    %s44 = sadd.s32 %s43, 1
    %s45 = scalar_select %p42, %s43, %s44
    %p48 = pneg %p42
    %p49 = scmp.eq.s32.totalorder %s12, 3
    %p50 = por %p48, %p49
    %p51 = scmp.ne.s32.totalorder %s43, %s46
    %p52 = scmp.eq.s32.totalorder %s12, 0
    %p53 = por %p51, %p52
    %p54 = scmp.ne.s32.totalorder %s43, %s46
    %p55 = scmp.eq.s32.totalorder %s17, 3
    %p56 = por %p54, %p55
    %p57 = scmp.ne.s32.totalorder %s46, %s47
    %p58 = scmp.eq.s32.totalorder %s17, 0
    %p59 = por %p57, %p58
    %p60 = scmp.ne.s32.totalorder %s46, %s47
    %p61 = scmp.eq.s32.totalorder %s18, 3
    %p62 = por %p60, %p61
    %p64 = scmp.ne.s32.totalorder %s47, %s63
    %p65 = scmp.eq.s32.totalorder %s18, 0
    %p66 = por %p64, %p65
    %s67 = ssub.s32 %s21, 1
    %p68 = scmp.gt.s32.totalorder %s67, 0
    %s69 = scalar_select %p68, %s67, 0
    %s70 = ssub.s32 %s30, 1
    %p71 = scmp.gt.s32.totalorder %s70, 0
    %s72 = scalar_select %p71, %s70, 0
    %s73 = ssub.s32 %s19, %s38
    %s74 = ssub.s32 %s69, %s72
    %s75 = sor.u32 %s73, %s74
    %p76 = scmp.eq.s32.totalorder %s75, 0
    %s78 = sadd.s32 %s77, 1
    %s79 = scalar_select %p76, %s77, %s78
    %p82 = pneg %p76
    %p83 = scmp.eq.s32.totalorder %s12, 3
    %p84 = por %p82, %p83
    %p85 = scmp.ne.s32.totalorder %s77, %s80
    %p86 = scmp.eq.s32.totalorder %s12, 0
    %p87 = por %p85, %p86
    %p88 = scmp.ne.s32.totalorder %s77, %s80
    %p89 = scmp.eq.s32.totalorder %s17, 3
    %p90 = por %p88, %p89
    %p91 = scmp.ne.s32.totalorder %s80, %s81
    %p92 = scmp.eq.s32.totalorder %s17, 0
    %p93 = por %p91, %p92
    %p94 = scmp.ne.s32.totalorder %s80, %s81
    %p95 = scmp.eq.s32.totalorder %s18, 3
    %p96 = por %p94, %p95
    %p98 = scmp.ne.s32.totalorder %s81, %s97
    %p99 = scmp.eq.s32.totalorder %s18, 0
    %p100 = por %p98, %p99
    %s101 = ssub.s32 %s19, %s38
    %s102 = ssub.s32 %s21, %s30
    %s103 = sor.u32 %s101, %s102
    %p104 = scmp.eq.s32.totalorder %s103, 0
    %s106 = sadd.s32 %s105, 1
    %s107 = scalar_select %p104, %s105, %s106
    %p110 = pneg %p104
    %p111 = scmp.eq.s32.totalorder %s12, 3
    %p112 = por %p110, %p111
    %p113 = scmp.ne.s32.totalorder %s105, %s108
    %p114 = scmp.eq.s32.totalorder %s12, 0
    %p115 = por %p113, %p114
    %p116 = scmp.ne.s32.totalorder %s105, %s108
    %p117 = scmp.eq.s32.totalorder %s17, 3
    %p118 = por %p116, %p117
    %p119 = scmp.ne.s32.totalorder %s108, %s109
    %p120 = scmp.eq.s32.totalorder %s17, 0
    %p121 = por %p119, %p120
    %p122 = scmp.ne.s32.totalorder %s108, %s109
    %p123 = scmp.eq.s32.totalorder %s18, 3
    %p124 = por %p122, %p123
    %p126 = scmp.ne.s32.totalorder %s109, %s125
    %p127 = scmp.eq.s32.totalorder %s18, 0
    %p128 = por %p126, %p127
    %s129 = ssub.s32 %s21, 1
    %p130 = scmp.gt.s32.totalorder %s129, 0
    %s131 = scalar_select %p130, %s129, 0
    %s132 = ssub.s32 %s30, 1
    %p133 = scmp.gt.s32.totalorder %s132, 0
    %s134 = scalar_select %p133, %s132, 0
    %s135 = ssub.s32 %s19, %s38
    %s136 = ssub.s32 %s131, %s134
    %s137 = sor.u32 %s135, %s136
    %p138 = scmp.eq.s32.totalorder %s137, 0
    %s140 = sadd.s32 %s139, 1
    %s141 = scalar_select %p138, %s139, %s140
    %p144 = pneg %p138
    %p145 = scmp.eq.s32.totalorder %s12, 3
    %p146 = por %p144, %p145
    %p147 = scmp.ne.s32.totalorder %s139, %s142
    %p148 = scmp.eq.s32.totalorder %s12, 0
    %p149 = por %p147, %p148
    %p150 = scmp.ne.s32.totalorder %s139, %s142
    %p151 = scmp.eq.s32.totalorder %s17, 3
    %p152 = por %p150, %p151
    %p153 = scmp.ne.s32.totalorder %s142, %s143
    %p154 = scmp.eq.s32.totalorder %s17, 0
    %p155 = por %p153, %p154
    %p156 = scmp.ne.s32.totalorder %s142, %s143
    %p157 = scmp.eq.s32.totalorder %s18, 3
    %p158 = por %p156, %p157
    %p160 = scmp.ne.s32.totalorder %s143, %s159
    %p161 = scmp.eq.s32.totalorder %s18, 0
    %p162 = por %p160, %p161
    %s163 = ssub.s32 %s20, %s34
    %p164 = scmp.eq.s32.totalorder %s163, 0
    %s166 = sadd.s32 %s165, 1
    %s167 = scalar_select %p164, %s165, %s166
    %p170 = pneg %p164
    %p171 = scmp.eq.s32.totalorder %s12, 3
    %p172 = por %p170, %p171
    %p173 = scmp.ne.s32.totalorder %s165, %s168
    %p174 = scmp.eq.s32.totalorder %s12, 0
    %p175 = por %p173, %p174
    %p176 = scmp.ne.s32.totalorder %s165, %s168
    %p177 = scmp.eq.s32.totalorder %s17, 3
    %p178 = por %p176, %p177
    %p179 = scmp.ne.s32.totalorder %s168, %s169
    %p180 = scmp.eq.s32.totalorder %s17, 0
    %p181 = por %p179, %p180
    %p182 = scmp.ne.s32.totalorder %s168, %s169
    %p183 = scmp.eq.s32.totalorder %s18, 3
    %p184 = por %p182, %p183
    %p186 = scmp.ne.s32.totalorder %s169, %s185
    %p187 = scmp.eq.s32.totalorder %s18, 0
    %p188 = por %p186, %p187
    %s189 = ssub.s32 %s20, %s34
    %p190 = scmp.eq.s32.totalorder %s189, 0
    %s192 = sadd.s32 %s191, 1
    %s193 = scalar_select %p190, %s191, %s192
    %p196 = pneg %p190
    %p197 = scmp.eq.s32.totalorder %s12, 3
    %p198 = por %p196, %p197
    %p199 = scmp.ne.s32.totalorder %s191, %s194
    %p200 = scmp.eq.s32.totalorder %s12, 0
    %p201 = por %p199, %p200
    %p202 = scmp.ne.s32.totalorder %s191, %s194
    %p203 = scmp.eq.s32.totalorder %s17, 3
    %p204 = por %p202, %p203
    %p205 = scmp.ne.s32.totalorder %s194, %s195
    %p206 = scmp.eq.s32.totalorder %s17, 0
    %p207 = por %p205, %p206
    %p208 = scmp.ne.s32.totalorder %s194, %s195
    %p209 = scmp.eq.s32.totalorder %s18, 3
    %p210 = por %p208, %p209
    %p212 = scmp.ne.s32.totalorder %s195, %s211
    %p213 = scmp.eq.s32.totalorder %s18, 0
    %p214 = por %p212, %p213
    %s215 = ssub.s32 %s19, %s38
    %s216 = ssub.s32 %s21, %s30
    %s217 = sor.u32 %s215, %s216
    %s218 = ssub.s32 %s20, %s34
    %s219 = sor.u32 %s217, %s218
    %p220 = scmp.eq.s32.totalorder %s219, 0
    %s222 = sadd.s32 %s221, 1
    %s223 = scalar_select %p220, %s221, %s222
    %p226 = pneg %p220
    %p227 = scmp.eq.s32.totalorder %s12, 3
    %p228 = por %p226, %p227
    %p229 = scmp.ne.s32.totalorder %s221, %s224
    %p230 = scmp.eq.s32.totalorder %s12, 0
    %p231 = por %p229, %p230
    %p232 = scmp.ne.s32.totalorder %s221, %s224
    %p233 = scmp.eq.s32.totalorder %s17, 3
    %p234 = por %p232, %p233
    %p235 = scmp.ne.s32.totalorder %s224, %s225
    %p236 = scmp.eq.s32.totalorder %s17, 0
    %p237 = por %p235, %p236
    %p238 = scmp.ne.s32.totalorder %s224, %s225
    %p239 = scmp.eq.s32.totalorder %s18, 3
    %p240 = por %p238, %p239
    %p242 = scmp.ne.s32.totalorder %s225, %s241
    %p243 = scmp.eq.s32.totalorder %s18, 0
    %p244 = por %p242, %p243
    %p245 = scmp.le.s32.totalorder 1, %s12
    %p246 = scmp.lt.s32.totalorder %s12, 5
    %p247 = pnand %p245, %p246
    %p248 = pneg %p247
    // Predicated region
    $region9: #{tpu_custom_call.1} parent=5 // pred_check
      _
    $region10: #{tpu_custom_call.1} parent=5 // pred_check_branch
      %250 = sbr.rel (%p247) target = $region12
    $region11: #{tpu_custom_call.1} parent=5 // pred_region
      %s251 = ssub.s32 %s12, 1
      // Predicated region
      $region13: #{tpu_custom_call.1} parent=11 // pred_check
        %p252 = pneg %p181
      $region14: #{tpu_custom_call.1} parent=11 // pred_check_branch
        %254 = sbr.rel (%p252) target = $region16
      $region15: #{tpu_custom_call.1} parent=11 // pred_region
        %p255 = scmp.lt.s32.totalorder %s23, 0
        %s256 = scalar_select %p255, %s23, 0
        %s257 = smul.addr %s256, 8
        %s258 = scalar_lea.vmem %s4, %s257
      $region16: #{tpu_custom_call.1} parent=11 // pred_fallthru
        _
      // Predicated region
      $region17: #{tpu_custom_call.1} parent=11 // pred_check
        %p259 = pneg %p207
      $region18: #{tpu_custom_call.1} parent=11 // pred_check_branch
        %261 = sbr.rel (%p259) target = $region20
      $region19: #{tpu_custom_call.1} parent=11 // pred_region
        %p262 = scmp.lt.s32.totalorder %s23, 0
        %s263 = scalar_select %p262, %s23, 0
        %s264 = scalar_lea.vmem %s5, %s263
      $region20: #{tpu_custom_call.1} parent=11 // pred_fallthru
        _
    $region12: #{tpu_custom_call.1} parent=5 // pred_fallthru
      _
    %p265 = scmp.lt.s32.totalorder %s12, 4
    // Predicated region
    $region21: #{tpu_custom_call.1} parent=5 // pred_check
      %p266 = pneg %p265
    $region22: #{tpu_custom_call.1} parent=5 // pred_check_branch
      %268 = sbr.rel (%p266) target = $region24
    $region23: #{tpu_custom_call.1} parent=5 // pred_region
      // Predicated region
      $region25: #{tpu_custom_call.1} parent=23 // pred_check
        %p269 = pneg %p53
      $region26: #{tpu_custom_call.1} parent=23 // pred_check_branch
        %271 = sbr.rel (%p269) target = $region28
      $region27: #{tpu_custom_call.1} parent=23 // pred_region
        %p272 = scmp.lt.s32.totalorder %s19, 1
        %s273 = scalar_select %p272, %s19, 1
        %p274 = scmp.lt.s32.totalorder %s21, 1
        %s275 = scalar_select %p274, %s21, 1
        %s276 = smul.addr %s273, 2
        %s277 = sadd.s32 %s275, %s276
        %s278 = smul.addr %s277, 8
        %s279 = scalar_lea.vmem %s0, %s278
      $region28: #{tpu_custom_call.1} parent=23 // pred_fallthru
        _
      // Predicated region
      $region29: #{tpu_custom_call.1} parent=23 // pred_check
        %p280 = pneg %p87
      $region30: #{tpu_custom_call.1} parent=23 // pred_check_branch
        %282 = sbr.rel (%p280) target = $region32
      $region31: #{tpu_custom_call.1} parent=23 // pred_region
        %s283 = ssub.s32 %s21, 1
        %p284 = scmp.gt.s32.totalorder %s283, 0
        %s285 = scalar_select %p284, %s283, 0
        %p286 = scmp.lt.s32.totalorder %s19, 1
        %s287 = scalar_select %p286, %s19, 1
        %p288 = scmp.lt.s32.totalorder %s285, 1
        %s289 = scalar_select %p288, %s285, 1
        %s290 = smul.addr %s287, 2
        %s291 = sadd.s32 %s289, %s290
        %s292 = smul.addr %s291, 8
        %s293 = scalar_lea.vmem %s1, %s292
        %s294 = ssub.s32 %s21, 1
        %p295 = scmp.gt.s32.totalorder %s294, 0
        %s296 = scalar_select %p295, %s294, 0
      $region32: #{tpu_custom_call.1} parent=23 // pred_fallthru
        _
      // Predicated region
      $region33: #{tpu_custom_call.1} parent=23 // pred_check
        %p297 = pneg %p115
      $region34: #{tpu_custom_call.1} parent=23 // pred_check_branch
        %299 = sbr.rel (%p297) target = $region36
      $region35: #{tpu_custom_call.1} parent=23 // pred_region
        %p300 = scmp.lt.s32.totalorder %s19, 1
        %s301 = scalar_select %p300, %s19, 1
        %p302 = scmp.lt.s32.totalorder %s21, 1
        %s303 = scalar_select %p302, %s21, 1
        %s304 = smul.addr %s301, 2
        %s305 = sadd.s32 %s303, %s304
        %s306 = smul.addr %s305, 8
        %s307 = scalar_lea.vmem %s2, %s306
      $region36: #{tpu_custom_call.1} parent=23 // pred_fallthru
        _
      // Predicated region
      $region37: #{tpu_custom_call.1} parent=23 // pred_check
        %p308 = pneg %p149
      $region38: #{tpu_custom_call.1} parent=23 // pred_check_branch
        %310 = sbr.rel (%p308) target = $region40
      $region39: #{tpu_custom_call.1} parent=23 // pred_region
        %s311 = ssub.s32 %s21, 1
        %p312 = scmp.gt.s32.totalorder %s311, 0
        %s313 = scalar_select %p312, %s311, 0
        %p314 = scmp.lt.s32.totalorder %s19, 1
        %s315 = scalar_select %p314, %s19, 1
        %p316 = scmp.lt.s32.totalorder %s313, 1
        %s317 = scalar_select %p316, %s313, 1
        %s318 = smul.addr %s315, 2
        %s319 = sadd.s32 %s317, %s318
        %s320 = smul.addr %s319, 8
        %s321 = scalar_lea.vmem %s3, %s320
        %s322 = ssub.s32 %s21, 1
        %p323 = scmp.gt.s32.totalorder %s322, 0
        %s324 = scalar_select %p323, %s322, 0
      $region40: #{tpu_custom_call.1} parent=23 // pred_fallthru
        _
    $region24: #{tpu_custom_call.1} parent=5 // pred_fallthru
      _
    %p325 = scmp.le.s32.totalorder 1, %s12
    %p326 = scmp.lt.s32.totalorder %s12, 5
    %p327 = pnand %p325, %p326
    %p328 = pneg %p327
    // Predicated region
    $region41: #{tpu_custom_call.1} parent=5 // pred_check
      _
    $region42: #{tpu_custom_call.1} parent=5 // pred_check_branch
      %330 = sbr.rel (%p327) target = $region44
    $region43: #{tpu_custom_call.1} parent=5 // pred_region
      %s331 = ssub.s32 %s12, 1
      %p332 = scmp.lt.s32.totalorder %s22, 1
      %s333 = scalar_select %p332, %s22, 1
      %p334 = scmp.lt.s32.totalorder %s24, 1
      %s335 = scalar_select %p334, %s24, 1
      %s336 = smul.addr %s333, 2
      %s337 = sadd.s32 %s335, %s336
      %s338 = smul.addr %s337, 8
      %s339 = scalar_lea.vmem %s0, %s338
      %p340 = pneg %p59
      %p341 = pneg %p56
      %s342 = ssub.s32 %s24, 1
      %p343 = scmp.gt.s32.totalorder %s342, 0
      %s344 = scalar_select %p343, %s342, 0
      %p345 = scmp.lt.s32.totalorder %s22, 1
      %s346 = scalar_select %p345, %s22, 1
      %p347 = scmp.lt.s32.totalorder %s344, 1
      %s348 = scalar_select %p347, %s344, 1
      %s349 = smul.addr %s346, 2
      %s350 = sadd.s32 %s348, %s349
      %s351 = smul.addr %s350, 8
      %s352 = scalar_lea.vmem %s1, %s351
      %p353 = pneg %p93
      %p354 = pneg %p90
      %p355 = scmp.lt.s32.totalorder %s22, 1
      %s356 = scalar_select %p355, %s22, 1
      %p357 = scmp.lt.s32.totalorder %s24, 1
      %s358 = scalar_select %p357, %s24, 1
      %s359 = smul.addr %s356, 2
      %s360 = sadd.s32 %s358, %s359
      %s361 = smul.addr %s360, 8
      %s362 = scalar_lea.vmem %s2, %s361
      %p363 = pneg %p121
      %p364 = pneg %p118
      %s365 = ssub.s32 %s24, 1
      %p366 = scmp.gt.s32.totalorder %s365, 0
      %s367 = scalar_select %p366, %s365, 0
      %p368 = scmp.lt.s32.totalorder %s22, 1
      %s369 = scalar_select %p368, %s22, 1
      %p370 = scmp.lt.s32.totalorder %s367, 1
      %s371 = scalar_select %p370, %s367, 1
      %s372 = smul.addr %s369, 2
      %s373 = sadd.s32 %s371, %s372
      %s374 = smul.addr %s373, 8
      %s375 = scalar_lea.vmem %s3, %s374
      %p376 = pneg %p155
      %p377 = pneg %p152
      %p378 = scmp.lt.s32.totalorder %s23, 0
      %s379 = scalar_select %p378, %s23, 0
      %s380 = smul.addr %s379, 8
      %s381 = scalar_lea.vmem %s4, %s380
      %p382 = pneg %p181
      %p383 = pneg %p178
      %p384 = scmp.lt.s32.totalorder %s23, 0
      %s385 = scalar_select %p384, %s23, 0
      %s386 = scalar_lea.vmem %s5, %s385
      %p387 = pneg %p207
      %p388 = pneg %p204
      %p389 = pneg %p237
      %p390 = pneg %p234
      %p391 = scmp.lt.s32.totalorder %s22, 1
      %s392 = scalar_select %p391, %s22, 1
      %p393 = scmp.lt.s32.totalorder %s24, 1
      %s394 = scalar_select %p393, %s24, 1
      %p395 = scmp.lt.s32.totalorder %s23, 0
      %s396 = scalar_select %p395, %s23, 0
      %s397 = sadd.s32 %s396, %s394
      %s398 = smul.addr %s392, 2
      %s399 = sadd.s32 %s397, %s398
      %s400 = smul.addr %s399, 8
      %s401 = scalar_lea.vmem %s6, %s400
      %p402 = scmp.lt.s32.totalorder %s22, 1
      %s403 = scalar_select %p402, %s22, 1
      %p404 = scmp.lt.s32.totalorder %s24, 1
      %s405 = scalar_select %p404, %s24, 1
      %s406 = smul.addr %s403, 2
      %s407 = sadd.s32 %s405, %s406
      %s408 = smul.addr %s407, 8
      %s409 = scalar_lea.vmem %s0, %s408
      %s410 = ssub.s32 %s24, 1
      %p411 = scmp.gt.s32.totalorder %s410, 0
      %s412 = scalar_select %p411, %s410, 0
      %p413 = scmp.lt.s32.totalorder %s22, 1
      %s414 = scalar_select %p413, %s22, 1
      %p415 = scmp.lt.s32.totalorder %s412, 1
      %s416 = scalar_select %p415, %s412, 1
      %s417 = smul.addr %s414, 2
      %s418 = sadd.s32 %s416, %s417
      %s419 = smul.addr %s418, 8
      %s420 = scalar_lea.vmem %s1, %s419
      %s421 = ssub.s32 %s24, 1
      %p422 = scmp.gt.s32.totalorder %s421, 0
      %s423 = scalar_select %p422, %s421, 0
      %p424 = scmp.lt.s32.totalorder %s22, 1
      %s425 = scalar_select %p424, %s22, 1
      %p426 = scmp.lt.s32.totalorder %s24, 1
      %s427 = scalar_select %p426, %s24, 1
      %s428 = smul.addr %s425, 2
      %s429 = sadd.s32 %s427, %s428
      %s430 = smul.addr %s429, 8
      %s431 = scalar_lea.vmem %s2, %s430
      %s432 = ssub.s32 %s24, 1
      %p433 = scmp.gt.s32.totalorder %s432, 0
      %s434 = scalar_select %p433, %s432, 0
      %p435 = scmp.lt.s32.totalorder %s22, 1
      %s436 = scalar_select %p435, %s22, 1
      %p437 = scmp.lt.s32.totalorder %s434, 1
      %s438 = scalar_select %p437, %s434, 1
      %s439 = smul.addr %s436, 2
      %s440 = sadd.s32 %s438, %s439
      %s441 = smul.addr %s440, 8
      %s442 = scalar_lea.vmem %s3, %s441
      %s443 = ssub.s32 %s24, 1
      %p444 = scmp.gt.s32.totalorder %s443, 0
      %s445 = scalar_select %p444, %s443, 0
      %p446 = scmp.lt.s32.totalorder %s23, 0
      %s447 = scalar_select %p446, %s23, 0
      %s448 = smul.addr %s447, 8
      %s449 = scalar_lea.vmem %s4, %s448
      %p450 = scmp.lt.s32.totalorder %s23, 0
      %s451 = scalar_select %p450, %s23, 0
      %s452 = scalar_lea.vmem %s5, %s451
      %p453 = scmp.lt.s32.totalorder %s22, 1
      %s454 = scalar_select %p453, %s22, 1
      %p455 = scmp.lt.s32.totalorder %s24, 1
      %s456 = scalar_select %p455, %s24, 1
      %p457 = scmp.lt.s32.totalorder %s23, 0
      %s458 = scalar_select %p457, %s23, 0
      %s459 = sadd.s32 %s458, %s456
      %s460 = smul.addr %s454, 2
      %s461 = sadd.s32 %s459, %s460
      %s462 = smul.addr %s461, 8
      %s463 = scalar_lea.vmem %s6, %s462
      %v464 = vld [vmem:[%s409] sm:$0xff]
      %v465 = vld [vmem:[%s431] sm:$0xff]
      %467 = vset.pattern.permute.xlu0 0
      %468 = vperm.xlu0 %467, %v465
      %v469 = vpop.permute.xlu0 %468
      %v471 = vmul.f32 %v464, %v469
      %vm472 = vcmask 64512
      %473 = vst.msk [vmem:[#allocation2 + $0x4] sm:$0xff] %vm472, %v471
      %p474 = scmp.eq.s32.totalorder %s24, 0
      // Predicated region
      $region45: #{tpu_custom_call.1} parent=43 // pred_check
        %p475 = pneg %p474
      $region46: #{tpu_custom_call.1} parent=43 // pred_check_branch
        %477 = sbr.rel (%p475) target = $region48
      $region47: #{tpu_custom_call.1} parent=43 // pred_region
        %vm478 = vcmask 60416
        %479 = vst.msk [vmem:[#allocation2] sm:$0xf] %vm478, 0.0
      $region48: #{tpu_custom_call.1} parent=43 // pred_fallthru
        _
      %p480 = scmp.gt.s32.totalorder %s24, 0
      // Predicated region
      $region49: #{tpu_custom_call.1} parent=43 // pred_check
        %p481 = pneg %p480
      $region50: #{tpu_custom_call.1} parent=43 // pred_check_branch
        %483 = sbr.rel (%p481) target = $region52
      $region51: #{tpu_custom_call.1} parent=43 // pred_region
        %v484 = vld [vmem:[%s420 + $0x4] sm:$0xf]
        %v485 = vld [vmem:[%s442 + $0x4] sm:$0xf]
        %487 = vset.pattern.permute.xlu0 0
        %488 = vperm.xlu0 %487, %v485
        %v489 = vpop.permute.xlu0 %488
        %v491 = vmul.f32 %v484, %v489
        %vm492 = vcmask 60416
        %493 = vst.msk [vmem:[#allocation2] sm:$0xf] %vm492, %v491
      $region52: #{tpu_custom_call.1} parent=43 // pred_fallthru
        _
      %v494 = vld [vmem:[#allocation2] sm:$0xff]
      %v495 = vld [vmem:[%s449] sm:$0xff]
      %v496 = vld [vmem:[#allocation2 + $0x2] sm:$0xff]
      %s497 = scalar_lea.vmem %s449, 8
      %v498 = vld [vmem:[%s497] sm:$0xff]
      %v500 = vsel %vm472, %v496, 0
      %502 = vmatprep.subr.mxu0 0.0
      %503 = vmatpush1.msra.mxu0 %v498
      %504 = vmatprep.subr.mxu0 0.0
      %505 = vmatpush1.msra.mxu0 0.0
      %506 = vmatprep.subr.mxu0 0.0
      %507 = vmatpush1.msra.mxu0 0.0
      %508 = vmatprep.subr.mxu0 0.0
      %509 = vmatpush1.msra.mxu0 0.0
      %510 = vmatprep.subr.mxu0 0.0
      %511 = vmatpush1.msra.mxu0 0.0
      %512 = vmatprep.subr.mxu0 0.0
      %513 = vmatpush1.msra.mxu0 0.0
      %514 = vmatprep.subr.mxu0 0.0
      %515 = vmatpush1.msra.mxu0 0.0
      %516 = vmatprep.subr.mxu0 0.0
      %517 = vmatpush1.msra.mxu0 0.0
      %518 = vmatprep.subr.mxu0 0.0
      %519 = vmatpush1.msra.mxu0 0.0
      %520 = vmatprep.subr.mxu0 0.0
      %521 = vmatpush1.msra.mxu0 0.0
      %522 = vmatprep.subr.mxu0 0.0
      %523 = vmatpush1.msra.mxu0 0.0
      %524 = vmatprep.subr.mxu0 0.0
      %525 = vmatpush1.msra.mxu0 0.0
      %526 = vmatprep.subr.mxu0 0.0
      %527 = vmatpush1.msra.mxu0 0.0
      %528 = vmatprep.subr.mxu0 0.0
      %529 = vmatpush1.msra.mxu0 0.0
      %530 = vmatprep.subr.mxu0 0.0
      %531 = vmatpush1.msra.mxu0 0.0
      %532 = vmatprep.subr.mxu0 0.0
      %533 = vmatpush1.msra.mxu0 0.0
      %534 = vmatprep.subr.mxu0 0.0
      %535 = vmatpush1.msra.mxu0 0.0
      %536 = vmatprep.subr.mxu0 0.0
      %537 = vmatpush1.msra.mxu0 0.0
      %538 = vmatprep.subr.mxu0 0.0
      %539 = vmatpush1.msra.mxu0 0.0
      %540 = vmatprep.subr.mxu0 0.0
      %541 = vmatpush1.msra.mxu0 0.0
      %542 = vmatprep.subr.mxu0 0.0
      %543 = vmatpush1.msra.mxu0 0.0
      %544 = vmatprep.subr.mxu0 0.0
      %545 = vmatpush1.msra.mxu0 0.0
      %546 = vmatprep.subr.mxu0 0.0
      %547 = vmatpush1.msra.mxu0 0.0
      %548 = vmatprep.subr.mxu0 0.0
      %549 = vmatpush1.msra.mxu0 0.0
      %550 = vmatprep.subr.mxu0 0.0
      %551 = vmatpush1.msra.mxu0 0.0
      %552 = vmatprep.subr.mxu0 0.0
      %553 = vmatpush1.msra.mxu0 0.0
      %554 = vmatprep.subr.mxu0 0.0
      %555 = vmatpush1.msra.mxu0 0.0
      %556 = vmatprep.subr.mxu0 0.0
      %557 = vmatpush1.msra.mxu0 0.0
      %558 = vmatprep.subr.mxu0 0.0
      %559 = vmatpush1.msra.mxu0 0.0
      %560 = vmatprep.subr.mxu0 0.0
      %561 = vmatpush1.msra.mxu0 0.0
      %562 = vmatprep.subr.mxu0 0.0
      %563 = vmatpush1.msra.mxu0 0.0
      %564 = vmatprep.subr.mxu0 0.0
      %565 = vmatpush1.msra.mxu0 0.0
      %566 = vmatprep.mubr.f32.mxu0 0.0
      %567 = vmatmul.mubr.f32.gmra.mrb[0].mxu0 %v500
      %v568 = vpop.f32.mrb[0].mxu0
      %v569 = vadd.f32 0.0, %v568
      %v570 = vpop.f32.mrb[0].mxu0
      %571 = vdwg.mxu0
      %v573 = vsel %vm472, %v494, 0
      %575 = vmatprep.subr.mxu0 0.0
      %576 = vmatpush1.msra.mxu0 %v495
      %577 = vmatprep.subr.mxu0 0.0
      %578 = vmatpush1.msra.mxu0 0.0
      %579 = vmatprep.subr.mxu0 0.0
      %580 = vmatpush1.msra.mxu0 0.0
      %581 = vmatprep.subr.mxu0 0.0
      %582 = vmatpush1.msra.mxu0 0.0
      %583 = vmatprep.subr.mxu0 0.0
      %584 = vmatpush1.msra.mxu0 0.0
      %585 = vmatprep.subr.mxu0 0.0
      %586 = vmatpush1.msra.mxu0 0.0
      %587 = vmatprep.subr.mxu0 0.0
      %588 = vmatpush1.msra.mxu0 0.0
      %589 = vmatprep.subr.mxu0 0.0
      %590 = vmatpush1.msra.mxu0 0.0
      %591 = vmatprep.subr.mxu0 0.0
      %592 = vmatpush1.msra.mxu0 0.0
      %593 = vmatprep.subr.mxu0 0.0
      %594 = vmatpush1.msra.mxu0 0.0
      %595 = vmatprep.subr.mxu0 0.0
      %596 = vmatpush1.msra.mxu0 0.0
      %597 = vmatprep.subr.mxu0 0.0
      %598 = vmatpush1.msra.mxu0 0.0
      %599 = vmatprep.subr.mxu0 0.0
      %600 = vmatpush1.msra.mxu0 0.0
      %601 = vmatprep.subr.mxu0 0.0
      %602 = vmatpush1.msra.mxu0 0.0
      %603 = vmatprep.subr.mxu0 0.0
      %604 = vmatpush1.msra.mxu0 0.0
      %605 = vmatprep.subr.mxu0 0.0
      %606 = vmatpush1.msra.mxu0 0.0
      %607 = vmatprep.subr.mxu0 0.0
      %608 = vmatpush1.msra.mxu0 0.0
      %609 = vmatprep.subr.mxu0 0.0
      %610 = vmatpush1.msra.mxu0 0.0
      %611 = vmatprep.subr.mxu0 0.0
      %612 = vmatpush1.msra.mxu0 0.0
      %613 = vmatprep.subr.mxu0 0.0
      %614 = vmatpush1.msra.mxu0 0.0
      %615 = vmatprep.subr.mxu0 0.0
      %616 = vmatpush1.msra.mxu0 0.0
      %617 = vmatprep.subr.mxu0 0.0
      %618 = vmatpush1.msra.mxu0 0.0
      %619 = vmatprep.subr.mxu0 0.0
      %620 = vmatpush1.msra.mxu0 0.0
      %621 = vmatprep.subr.mxu0 0.0
      %622 = vmatpush1.msra.mxu0 0.0
      %623 = vmatprep.subr.mxu0 0.0
      %624 = vmatpush1.msra.mxu0 0.0
      %625 = vmatprep.subr.mxu0 0.0
      %626 = vmatpush1.msra.mxu0 0.0
      %627 = vmatprep.subr.mxu0 0.0
      %628 = vmatpush1.msra.mxu0 0.0
      %629 = vmatprep.subr.mxu0 0.0
      %630 = vmatpush1.msra.mxu0 0.0
      %631 = vmatprep.subr.mxu0 0.0
      %632 = vmatpush1.msra.mxu0 0.0
      %633 = vmatprep.subr.mxu0 0.0
      %634 = vmatpush1.msra.mxu0 0.0
      %635 = vmatprep.subr.mxu0 0.0
      %636 = vmatpush1.msra.mxu0 0.0
      %637 = vmatprep.subr.mxu0 0.0
      %638 = vmatpush1.msra.mxu0 0.0
      %639 = vmatprep.mubr.f32.mxu0 0.0
      %640 = vmatmul.mubr.f32.gmra.mrb[0].mxu0 %v573
      %v641 = vpop.f32.mrb[0].mxu0
      %v642 = vadd.f32 %v569, %v641
      %v643 = vpop.f32.mrb[0].mxu0
      %644 = vdwg.mxu0
      %v645 = vld [vmem:[#allocation2 + $0x4] sm:$0xff]
      %s646 = scalar_lea.vmem %s449, 16
      %v647 = vld [vmem:[%s646] sm:$0xff]
      %v649 = vsel %vm472, %v645, 0
      %651 = vmatprep.subr.mxu0 0.0
      %652 = vmatpush1.msra.mxu0 %v647
      %653 = vmatprep.subr.mxu0 0.0
      %654 = vmatpush1.msra.mxu0 0.0
      %655 = vmatprep.subr.mxu0 0.0
      %656 = vmatpush1.msra.mxu0 0.0
      %657 = vmatprep.subr.mxu0 0.0
      %658 = vmatpush1.msra.mxu0 0.0
      %659 = vmatprep.subr.mxu0 0.0
      %660 = vmatpush1.msra.mxu0 0.0
      %661 = vmatprep.subr.mxu0 0.0
      %662 = vmatpush1.msra.mxu0 0.0
      %663 = vmatprep.subr.mxu0 0.0
      %664 = vmatpush1.msra.mxu0 0.0
      %665 = vmatprep.subr.mxu0 0.0
      %666 = vmatpush1.msra.mxu0 0.0
      %667 = vmatprep.subr.mxu0 0.0
      %668 = vmatpush1.msra.mxu0 0.0
      %669 = vmatprep.subr.mxu0 0.0
      %670 = vmatpush1.msra.mxu0 0.0
      %671 = vmatprep.subr.mxu0 0.0
      %672 = vmatpush1.msra.mxu0 0.0
      %673 = vmatprep.subr.mxu0 0.0
      %674 = vmatpush1.msra.mxu0 0.0
      %675 = vmatprep.subr.mxu0 0.0
      %676 = vmatpush1.msra.mxu0 0.0
      %677 = vmatprep.subr.mxu0 0.0
      %678 = vmatpush1.msra.mxu0 0.0
      %679 = vmatprep.subr.mxu0 0.0
      %680 = vmatpush1.msra.mxu0 0.0
      %681 = vmatprep.subr.mxu0 0.0
      %682 = vmatpush1.msra.mxu0 0.0
      %683 = vmatprep.subr.mxu0 0.0
      %684 = vmatpush1.msra.mxu0 0.0
      %685 = vmatprep.subr.mxu0 0.0
      %686 = vmatpush1.msra.mxu0 0.0
      %687 = vmatprep.subr.mxu0 0.0
      %688 = vmatpush1.msra.mxu0 0.0
      %689 = vmatprep.subr.mxu0 0.0
      %690 = vmatpush1.msra.mxu0 0.0
      %691 = vmatprep.subr.mxu0 0.0
      %692 = vmatpush1.msra.mxu0 0.0
      %693 = vmatprep.subr.mxu0 0.0
      %694 = vmatpush1.msra.mxu0 0.0
      %695 = vmatprep.subr.mxu0 0.0
      %696 = vmatpush1.msra.mxu0 0.0
      %697 = vmatprep.subr.mxu0 0.0
      %698 = vmatpush1.msra.mxu0 0.0
      %699 = vmatprep.subr.mxu0 0.0
      %700 = vmatpush1.msra.mxu0 0.0
      %701 = vmatprep.subr.mxu0 0.0
      %702 = vmatpush1.msra.mxu0 0.0
      %703 = vmatprep.subr.mxu0 0.0
      %704 = vmatpush1.msra.mxu0 0.0
      %705 = vmatprep.subr.mxu0 0.0
      %706 = vmatpush1.msra.mxu0 0.0
      %707 = vmatprep.subr.mxu0 0.0
      %708 = vmatpush1.msra.mxu0 0.0
      %709 = vmatprep.subr.mxu0 0.0
      %710 = vmatpush1.msra.mxu0 0.0
      %711 = vmatprep.subr.mxu0 0.0
      %712 = vmatpush1.msra.mxu0 0.0
      %713 = vmatprep.subr.mxu0 0.0
      %714 = vmatpush1.msra.mxu0 0.0
      %715 = vmatprep.mubr.f32.mxu0 0.0
      %716 = vmatmul.mubr.f32.gmra.mrb[0].mxu0 %v649
      %v717 = vpop.f32.mrb[0].mxu0
      %v718 = vadd.f32 0.0, %v717
      %v719 = vpop.f32.mrb[0].mxu0
      %720 = vdwg.mxu0
      %v721 = vadd.f32 %v642, %v718
      %v722 = vld [vmem:[%s452] sm:$0x1]
      %v724 = vlaneseq
      %v725 = vshrl.u32 %v724, 7
      %v726 = vsub.s32 0, %v725
      %v727 = vrot.slane %v722, %v726
      %v729 = vadd.f32 %v721, %v727
      %730 = vst.msk [vmem:[%s463] sm:$0xff] %vm472, %v729
      %p731 = scmp.lt.s32.totalorder %s22, 1
      %s732 = scalar_select %p731, %s22, 1
      %p733 = scmp.lt.s32.totalorder %s24, 1
      %s734 = scalar_select %p733, %s24, 1
      %p735 = scmp.lt.s32.totalorder %s23, 0
      %s736 = scalar_select %p735, %s23, 0
      %s737 = sadd.s32 %s736, %s734
      %s738 = smul.addr %s732, 2
      %s739 = sadd.s32 %s737, %s738
      %s740 = smul.addr %s739, 8
      %s741 = scalar_lea.vmem %s6, %s740
      // Predicated region
      $region53: #{tpu_custom_call.1} parent=43 // pred_check
        %p742 = pneg %p234
      $region54: #{tpu_custom_call.1} parent=43 // pred_check_branch
        %744 = sbr.rel (%p742) target = $region56
      $region55: #{tpu_custom_call.1} parent=43 // pred_region
        _
      $region56: #{tpu_custom_call.1} parent=43 // pred_fallthru
        _
    $region44: #{tpu_custom_call.1} parent=5 // pred_fallthru
      _
    %p745 = scmp.le.s32.totalorder 2, %s12
    // Predicated region
    $region57: #{tpu_custom_call.1} parent=5 // pred_check
      %p746 = pneg %p745
    $region58: #{tpu_custom_call.1} parent=5 // pred_check_branch
      %748 = sbr.rel (%p746) target = $region60
    $region59: #{tpu_custom_call.1} parent=5 // pred_region
      %s749 = ssub.s32 %s12, 2
      // Predicated region
      $region61: #{tpu_custom_call.1} parent=59 // pred_check
        %p750 = pneg %p240
      $region62: #{tpu_custom_call.1} parent=59 // pred_check_branch
        %752 = sbr.rel (%p750) target = $region64
      $region63: #{tpu_custom_call.1} parent=59 // pred_region
        %p753 = scmp.lt.s32.totalorder %s25, 1
        %s754 = scalar_select %p753, %s25, 1
        %p755 = scmp.lt.s32.totalorder %s27, 1
        %s756 = scalar_select %p755, %s27, 1
        %p757 = scmp.lt.s32.totalorder %s26, 0
        %s758 = scalar_select %p757, %s26, 0
        %s759 = sadd.s32 %s758, %s756
        %s760 = smul.addr %s754, 2
        %s761 = sadd.s32 %s759, %s760
        %s762 = smul.addr %s761, 8
        %s763 = scalar_lea.vmem %s6, %s762
      $region64: #{tpu_custom_call.1} parent=59 // pred_fallthru
        _
    $region60: #{tpu_custom_call.1} parent=5 // pred_fallthru
      _
  $region6: #{tpu_custom_call.1} parent=0 // loop_footer
    %s16 = sadd.s32 1, %s12
  $region7: #{tpu_custom_call.1} parent=0 // loop_footer_branch
    %11 = sbr.rel target = $region3
  $region8: #{tpu_custom_call.1} parent=0 // loop_exit
    _

</llo_original>
